<compile_context>
chip_gen: v7x
topology: tpu7x:2x2x1
jax: 0.10.0
libtpu: 0.0.40
codegen_flags: <defaults>
</compile_context>

<pallas_src>
import jax
import jax.numpy as jnp
from jax.experimental import pallas as pl
from jax.experimental.pallas import tpu as pltpu


def convblock_kernel(x_ref, w1_ref, b1_ref, w2_ref, b2_ref, o_ref):
    # x_ref / o_ref: (nb, C_in, tl)  -- positions on lanes, channels on sublanes.
    # w1_ref: (expand, C_in), b1_ref: (expand, 1)
    # w2_ref: (C_in, expand), b2_ref: (C_in, 1)
    nb = x_ref.shape[0]
    w1 = w1_ref[...].astype(jnp.float32)
    b1 = b1_ref[...].astype(jnp.float32)
    w2 = w2_ref[...].astype(jnp.float32)
    b2 = b2_ref[...].astype(jnp.float32)
    # nb is a small static constant (<= max_nb), so this loop is unrolled at trace time.
    for b in range(nb):
        x = x_ref[b].astype(jnp.float32)                                   # (C_in, tl)
        h = jnp.dot(w1, x, preferred_element_type=jnp.float32) + b1        # (expand, tl)
        h = jnp.maximum(h, 0.0)                                            # ReLU
        y = jnp.dot(w2, h, preferred_element_type=jnp.float32) + b2        # (C_in, tl)
        y = jnp.maximum(y, 0.0)                                            # ReLU
        # Dropout: identity in eval mode.
        o_ref[b] = y.astype(o_ref.dtype)


def _pick_tiles(N, C_in, L, itemsize, target_bytes, max_nb):
    """Choose (nb, tl): nb divides N; tl == L (full extent) or tl % 128 == 0."""
    pos_budget = max(128, target_bytes // (C_in * itemsize))
    if L > pos_budget:
        # Long sequences: tile along lanes only.  The ragged last tile is masked by
        # Pallas (tl is a multiple of 128), so no padding / slicing is needed.
        tl = (pos_budget // 128) * 128
        return 1, tl
    # L fits in one full-extent lane tile: block whole batch elements per step so each
    # DMA is one contiguous nb*C_in*L slab (NCW is contiguous across n for full C, L).
    nb = 1
    for d in range(min(N, max_nb), 0, -1):
        if N % d == 0 and d * L <= pos_budget:
            nb = d
            break
    # Prefer >=2 grid steps so megacore (v7x) has something for the second core.
    if nb > 1 and N // nb == 1:
        for d in range(nb - 1, 0, -1):
            if N % d == 0:
                nb = d
                break
    return nb, L


def convblock_forward(x_ncl, w1, b1, w2, b2, *,
                      target_bytes=2 * 1024 * 1024, max_nb=8):
    """x_ncl: (N, C_in, L).  w1: (expand, C_in), b1: (expand,), w2: (C_in, expand),
    b2: (C_in,) -- PyTorch Conv1d weights with the trailing k=1 dim squeezed."""
    N, C_in, L = x_ncl.shape
    expand = w1.shape[0]

    nb, tl = _pick_tiles(N, C_in, L, x_ncl.dtype.itemsize, target_bytes, max_nb)
    grid = (N // nb, pl.cdiv(L, tl))

    # Biases as 2-D column vectors so they broadcast along lanes inside the kernel.
    b1_2d = b1.reshape(expand, 1)
    b2_2d = b2.reshape(C_in, 1)

    return pl.pallas_call(
        convblock_kernel,
        out_shape=jax.ShapeDtypeStruct((N, C_in, L), x_ncl.dtype),
        grid_spec=pl.GridSpec(
            grid=grid,
            in_specs=[
                # x: (nb, C_in, tl) tile with L on lanes; no pad -> ragged tail masked.
                pl.BlockSpec((nb, C_in, tl), lambda i, j: (i, 0, j)),
                # Weights / biases: grid-invariant, stay resident in VMEM.
                pl.BlockSpec((expand, C_in), lambda i, j: (0, 0)),
                pl.BlockSpec((expand, 1), lambda i, j: (0, 0)),
                pl.BlockSpec((C_in, expand), lambda i, j: (0, 0)),
                pl.BlockSpec((C_in, 1), lambda i, j: (0, 0)),
            ],
            out_specs=pl.BlockSpec((nb, C_in, tl), lambda i, j: (i, 0, j)),
        ),
        compiler_params=pltpu.CompilerParams(
            # Both grid axes are independent -> megacore sharding.
            dimension_semantics=("parallel", "parallel"),
            # Headroom for double-buffered in/out (+ sublane-padded intermediates);
            # stays within v7x's 64 MiB physical VMEM.
            vmem_limit_bytes=48 * 1024 * 1024,
        ),
    )(x_ncl, w1, b1_2d, w2, b2_2d)


def reference_forward(x_ncl, w1, b1, w2, b2):
    # Pure-JAX reference of the same eval-mode forward.
    h = jnp.einsum("ncl,ec->nel", x_ncl, w1) + b1[None, :, None]
    h = jnp.maximum(h, 0.0)
    y = jnp.einsum("nel,ce->ncl", h, w2) + b2[None, :, None]
    return jnp.maximum(y, 0.0)


if __name__ == "__main__":
    # Shapes consistent with the module: ConvBlock(input=4, expand=8), x = (N, C_in, L).
    C_in, expand = 4, 8

    key = jax.random.PRNGKey(0)
    kx, kw1, kb1, kw2, kb2 = jax.random.split(key, 5)

    # Conv1d weight shape (out, in, 1) with the trailing k=1 dim squeezed.
    w1 = jax.random.normal(kw1, (expand, C_in), dtype=jnp.float32) * 0.1
    b1 = jax.random.normal(kb1, (expand,), dtype=jnp.float32) * 0.1
    w2 = jax.random.normal(kw2, (C_in, expand), dtype=jnp.float32) * 0.1
    b2 = jax.random.normal(kb2, (C_in,), dtype=jnp.float32) * 0.1

    # Path 1: small (N=2, L=16) -- single full-extent lane tile per batch element.
    x = jax.random.normal(kx, (2, C_in, 16), dtype=jnp.float32)
    out = jax.block_until_ready(convblock_forward(x, w1, b1, w2, b2))
    ref = reference_forward(x, w1, b1, w2, b2)
    assert out.shape == x.shape
    assert jnp.allclose(out, ref, atol=1e-5, rtol=1e-5)

    # Path 2: L tiled along lanes with a ragged (masked) last tile (L=300, tl forced to 128).
    x2 = jax.random.normal(kx, (2, C_in, 300), dtype=jnp.float32)
    out2 = jax.block_until_ready(
        convblock_forward(x2, w1, b1, w2, b2, target_bytes=2048))
    ref2 = reference_forward(x2, w1, b1, w2, b2)
    assert out2.shape == x2.shape
    assert jnp.allclose(out2, ref2, atol=1e-5, rtol=1e-5)

    # Path 3: several batch elements blocked per grid step (nb > 1).
    x3 = jax.random.normal(kx, (4, C_in, 64), dtype=jnp.float32)
    out3 = jax.block_until_ready(convblock_forward(x3, w1, b1, w2, b2))
    ref3 = reference_forward(x3, w1, b1, w2, b2)
    assert out3.shape == x3.shape
    assert jnp.allclose(out3, ref3, atol=1e-5, rtol=1e-5)

    print("KERNEL_OK")
</pallas_src>

<mosaic_0001>
module attributes {stable_mosaic.version = 11 : i64} {
  func.func @convblock_kernel(%arg0: i32, %arg1: i32, %arg2: memref<1x4x16xf32, #tpu.memory_space<vmem>>, %arg3: memref<8x4xf32, #tpu.memory_space<vmem>>, %arg4: memref<8x1xf32, #tpu.memory_space<vmem>>, %arg5: memref<4x8xf32, #tpu.memory_space<vmem>>, %arg6: memref<4x1xf32, #tpu.memory_space<vmem>>, %arg7: memref<1x4x16xf32, #tpu.memory_space<vmem>>) attributes {dimension_semantics = [#tpu.dimension_semantics<parallel>, #tpu.dimension_semantics<parallel>], iteration_bounds = array<i64: 2, 1>, scalar_prefetch = 0 : i64, scratch_operands = 0 : i64, tpu.core_type = #tpu.core_type<tc>, window_params = [{transform_indices = @transform_0, window_bounds = array<i64: 1, 4, 16>}, {pipeline_mode = #tpu.pipeline_mode<synchronous>, transform_indices = @transform_1, window_bounds = array<i64: 8, 4>}, {pipeline_mode = #tpu.pipeline_mode<synchronous>, transform_indices = @transform_2, window_bounds = array<i64: 8, 1>}, {pipeline_mode = #tpu.pipeline_mode<synchronous>, transform_indices = @transform_3, window_bounds = array<i64: 4, 8>}, {pipeline_mode = #tpu.pipeline_mode<synchronous>, transform_indices = @transform_4, window_bounds = array<i64: 4, 1>}, {transform_indices = @transform_5, window_bounds = array<i64: 1, 4, 16>}]} {
    %c0 = arith.constant 0 : index
    %c0_0 = arith.constant 0 : index
    %0 = vector.load %arg3[%c0, %c0_0] : memref<8x4xf32, #tpu.memory_space<vmem>>, vector<8x4xf32>
    %c0_1 = arith.constant 0 : index
    %c0_2 = arith.constant 0 : index
    %1 = vector.load %arg4[%c0_1, %c0_2] : memref<8x1xf32, #tpu.memory_space<vmem>>, vector<8x1xf32>
    %c0_3 = arith.constant 0 : index
    %c0_4 = arith.constant 0 : index
    %2 = vector.load %arg5[%c0_3, %c0_4] : memref<4x8xf32, #tpu.memory_space<vmem>>, vector<4x8xf32>
    %c0_5 = arith.constant 0 : index
    %c0_6 = arith.constant 0 : index
    %3 = vector.load %arg6[%c0_5, %c0_6] : memref<4x1xf32, #tpu.memory_space<vmem>>, vector<4x1xf32>
    %c0_7 = arith.constant 0 : index
    %c0_8 = arith.constant 0 : index
    %c0_9 = arith.constant 0 : index
    %4 = vector.load %arg2[%c0_7, %c0_8, %c0_9] : memref<1x4x16xf32, #tpu.memory_space<vmem>>, vector<1x4x16xf32>
    %5 = vector.shape_cast %4 : vector<1x4x16xf32> to vector<4x16xf32>
    %cst = arith.constant dense<0.000000e+00> : vector<8x16xf32>
    %6 = tpu.matmul %0, %5, %cst {dimension_numbers = #tpu.dot_dimension_numbers<[1], [0], [0], [1], [0, 0, 1, 1], [], []>} : vector<8x4xf32>, vector<4x16xf32>, vector<8x16xf32> -> vector<8x16xf32>
    %7 = vector.broadcast %1 : vector<8x1xf32> to vector<8x16xf32>
    %8 = arith.addf %6, %7 : vector<8x16xf32>
    %cst_10 = arith.constant 0.000000e+00 : f32
    %9 = vector.broadcast %cst_10 : f32 to vector<8x16xf32>
    %10 = arith.maximumf %8, %9 : vector<8x16xf32>
    %cst_11 = arith.constant dense<0.000000e+00> : vector<4x16xf32>
    %11 = tpu.matmul %2, %10, %cst_11 {dimension_numbers = #tpu.dot_dimension_numbers<[1], [0], [0], [1], [0, 0, 1, 1], [], []>} : vector<4x8xf32>, vector<8x16xf32>, vector<4x16xf32> -> vector<4x16xf32>
    %12 = vector.broadcast %3 : vector<4x1xf32> to vector<4x16xf32>
    %13 = arith.addf %11, %12 : vector<4x16xf32>
    %cst_12 = arith.constant 0.000000e+00 : f32
    %14 = vector.broadcast %cst_12 : f32 to vector<4x16xf32>
    %15 = arith.maximumf %13, %14 : vector<4x16xf32>
    %c0_13 = arith.constant 0 : index
    %c0_14 = arith.constant 0 : index
    %c0_15 = arith.constant 0 : index
    %16 = vector.load %arg7[%c0_13, %c0_14, %c0_15] : memref<1x4x16xf32, #tpu.memory_space<vmem>>, vector<1x4x16xf32>
    %17 = vector.shape_cast %16 : vector<1x4x16xf32> to vector<4x16xf32>
    %18 = vector.shape_cast %15 : vector<4x16xf32> to vector<1x4x16xf32>
    tpu.vector_store %arg7[%c0_13, %c0_14, %c0_15], %18 {strides = array<i32>} : memref<1x4x16xf32, #tpu.memory_space<vmem>>, vector<1x4x16xf32>,
    return
  }
  func.func @transform_0(%arg0: i32, %arg1: i32) -> (i32, i32, i32) {
    %c0_i32 = arith.constant 0 : i32
    %c0_i32_0 = arith.constant 0 : i32
    return %arg0, %c0_i32, %arg1 : i32, i32, i32
  }
  func.func @transform_1(%arg0: i32, %arg1: i32) -> (i32, i32) {
    %c0_i32 = arith.constant 0 : i32
    %c0_i32_0 = arith.constant 0 : i32
    %c0_i32_1 = arith.constant 0 : i32
    return %c0_i32, %c0_i32_0 : i32, i32
  }
  func.func @transform_2(%arg0: i32, %arg1: i32) -> (i32, i32) {
    %c0_i32 = arith.constant 0 : i32
    %c0_i32_0 = arith.constant 0 : i32
    %c0_i32_1 = arith.constant 0 : i32
    return %c0_i32, %c0_i32_0 : i32, i32
  }
  func.func @transform_3(%arg0: i32, %arg1: i32) -> (i32, i32) {
    %c0_i32 = arith.constant 0 : i32
    %c0_i32_0 = arith.constant 0 : i32
    %c0_i32_1 = arith.constant 0 : i32
    return %c0_i32, %c0_i32_0 : i32, i32
  }
  func.func @transform_4(%arg0: i32, %arg1: i32) -> (i32, i32) {
    %c0_i32 = arith.constant 0 : i32
    %c0_i32_0 = arith.constant 0 : i32
    %c0_i32_1 = arith.constant 0 : i32
    return %c0_i32, %c0_i32_0 : i32, i32
  }
  func.func @transform_5(%arg0: i32, %arg1: i32) -> (i32, i32, i32) {
    %c0_i32 = arith.constant 0 : i32
    %c0_i32_0 = arith.constant 0 : i32
    return %arg0, %c0_i32, %arg1 : i32, i32, i32
  }
}

</mosaic_0001>

<llo_original>
// kernel: tpu_custom_call.1
$region0: #{tpu_custom_call.1}
  #allocation0 [shape = 'u32[]', space=smem, size = 0x4, offset = 0x4, fixed_abs, tag = 'smem constant byte address 0x4 - core index']
  #allocation1 [shape = 'u32[144,128]{1,0:T(1,128)}', space=vmem, size = 0x12000, scoped, tag = 'internal scratch']
  %s0 = inlined_call_operand.vmem [shape: f32[2,4,16], index: 0, kind: input, shape index: {}]
  %s1 = inlined_call_operand.vmem [shape: f32[8,4], index: 1, kind: input, shape index: {}]
  %s2 = inlined_call_operand.vmem [shape: f32[8,1], index: 2, kind: input, shape index: {}]
  %s3 = inlined_call_operand.vmem [shape: f32[4,8], index: 3, kind: input, shape index: {}]
  %s4 = inlined_call_operand.vmem [shape: f32[4,1], index: 4, kind: input, shape index: {}]
  %s5 = inlined_call_operand.hbm [shape: f32[2,4,16], index: 5, kind: output, shape index: {}]
  %s6 = sld [smem:[#allocation0]]
  $region53: #{tpu_custom_call.1} parent=0
    _
  %s8 = ssub.s32 1, %s6
  %s9 = scalar_select 0, %s8, %s6
  $region1: #{tpu_custom_call.1} parent=0
    #allocation2 [shape = 'u8[4096]{0}', space=vmem, size = 0x1000, scoped, tag = 'output window, operand 0']
    #allocation3 [shape = 's32[2]{0}', space=sflag, size = 0x8, scoped, tag = 'scoped memory for tpu_custom_call.1']
    %10 = vsyncpa [#allocation3], 0
    %s11 = scalar_lea.sflag [#allocation3], 1
    %12 = vsyncpa %s11, 0
    loop: start=0, step=1, limit=4
    $region2: #{tpu_custom_call.1} parent=1 // loop_pre_header
      _
    $region3: #{tpu_custom_call.1} parent=1 // loop_header
      %s14 = sphi 0, %s18
      %p15 = scmp.ge.s32.totalorder %s14, 4
      %s21 = sphi 0, %s33
      %s22 = sphi 0, %s29
      %s23 = sphi 0, %s21
      %s24 = sphi 0, %s22
      %s25 = sphi 0, %s23
      %s26 = sphi 0, %s24
      %s38 = sphi 0, %s40
      %s41 = sphi 0, %s38
      %s42 = sphi 0, %s41
      %s58 = sphi 0, %s42
      %s62 = sphi 0, %s62
      %s64 = sphi 0, %s62
      %s65 = sphi 0, %s64
      %s79 = sphi 0, %s65
      %s83 = sphi 0, %s83
      %s85 = sphi 0, %s83
      %s86 = sphi 0, %s85
      %s100 = sphi 0, %s86
      %s104 = sphi 0, %s104
      %s106 = sphi 0, %s104
      %s107 = sphi 0, %s106
      %s121 = sphi 0, %s107
      %s125 = sphi 0, %s125
      %s127 = sphi 0, %s125
      %s128 = sphi 0, %s127
      %s142 = sphi 0, %s128
      %s150 = sphi 0, %s152
      %s153 = sphi 0, %s150
      %s154 = sphi 0, %s153
      %s170 = sphi 0, %s154
    $region4: #{tpu_custom_call.1} parent=1 // loop_header_branch
      %17 = sbr.rel (%p15) target = $region8
    $region5: #{tpu_custom_call.1} parent=1 // loop_body
      %s19 = ssub.s32 %s14, 1
      %s20 = ssub.s32 %s14, 2
      %s27 = sadd.s32 1, %s22
      %p28 = scmp.ge.s32.totalorder %s27, 1
      %s29 = scalar_select %p28, 0, %s27
      %s30 = sadd.s32 1, %s21
      %s31 = scalar_select %p28, %s30, %s21
      %p32 = scmp.ge.s32.totalorder %s31, 2
      %s33 = scalar_select %p32, 0, %s31
      %s34 = ssub.s32 %s21, %s33
      %s35 = ssub.s32 %s22, %s29
      %s36 = sor.u32 %s34, %s35
      %p37 = scmp.eq.s32.totalorder %s36, 0
      %s39 = sadd.s32 %s38, 1
      %s40 = scalar_select %p37, %s38, %s39
      %p43 = pneg %p37
      %p44 = scmp.eq.s32.totalorder %s14, 1
      %p45 = por %p43, %p44
      %p46 = scmp.ne.s32.totalorder %s38, %s41
      %p47 = scmp.eq.s32.totalorder %s14, 0
      %p48 = por %p46, %p47
      %p49 = scmp.ne.s32.totalorder %s38, %s41
      %p50 = scmp.eq.s32.totalorder %s19, 1
      %p51 = por %p49, %p50
      %p52 = scmp.ne.s32.totalorder %s41, %s42
      %p53 = scmp.eq.s32.totalorder %s19, 0
      %p54 = por %p52, %p53
      %p55 = scmp.ne.s32.totalorder %s41, %s42
      %p56 = scmp.eq.s32.totalorder %s20, 1
      %p57 = por %p55, %p56
      %p59 = scmp.ne.s32.totalorder %s42, %s58
      %p60 = scmp.eq.s32.totalorder %s20, 0
      %p61 = por %p59, %p60
      %s63 = sadd.s32 %s62, 1
      %p66 = scmp.eq.s32.totalorder %s14, 1
      %p67 = scmp.ne.s32.totalorder %s62, %s64
      %p68 = scmp.eq.s32.totalorder %s14, 0
      %p69 = por %p67, %p68
      %p70 = scmp.ne.s32.totalorder %s62, %s64
      %p71 = scmp.eq.s32.totalorder %s19, 1
      %p72 = por %p70, %p71
      %p73 = scmp.ne.s32.totalorder %s64, %s65
      %p74 = scmp.eq.s32.totalorder %s19, 0
      %p75 = por %p73, %p74
      %p76 = scmp.ne.s32.totalorder %s64, %s65
      %p77 = scmp.eq.s32.totalorder %s20, 1
      %p78 = por %p76, %p77
      %p80 = scmp.ne.s32.totalorder %s65, %s79
      %p81 = scmp.eq.s32.totalorder %s20, 0
      %p82 = por %p80, %p81
      %s84 = sadd.s32 %s83, 1
      %p87 = scmp.eq.s32.totalorder %s14, 1
      %p88 = scmp.ne.s32.totalorder %s83, %s85
      %p89 = scmp.eq.s32.totalorder %s14, 0
      %p90 = por %p88, %p89
      %p91 = scmp.ne.s32.totalorder %s83, %s85
      %p92 = scmp.eq.s32.totalorder %s19, 1
      %p93 = por %p91, %p92
      %p94 = scmp.ne.s32.totalorder %s85, %s86
      %p95 = scmp.eq.s32.totalorder %s19, 0
      %p96 = por %p94, %p95
      %p97 = scmp.ne.s32.totalorder %s85, %s86
      %p98 = scmp.eq.s32.totalorder %s20, 1
      %p99 = por %p97, %p98
      %p101 = scmp.ne.s32.totalorder %s86, %s100
      %p102 = scmp.eq.s32.totalorder %s20, 0
      %p103 = por %p101, %p102
      %s105 = sadd.s32 %s104, 1
      %p108 = scmp.eq.s32.totalorder %s14, 1
      %p109 = scmp.ne.s32.totalorder %s104, %s106
      %p110 = scmp.eq.s32.totalorder %s14, 0
      %p111 = por %p109, %p110
      %p112 = scmp.ne.s32.totalorder %s104, %s106
      %p113 = scmp.eq.s32.totalorder %s19, 1
      %p114 = por %p112, %p113
      %p115 = scmp.ne.s32.totalorder %s106, %s107
      %p116 = scmp.eq.s32.totalorder %s19, 0
      %p117 = por %p115, %p116
      %p118 = scmp.ne.s32.totalorder %s106, %s107
      %p119 = scmp.eq.s32.totalorder %s20, 1
      %p120 = por %p118, %p119
      %p122 = scmp.ne.s32.totalorder %s107, %s121
      %p123 = scmp.eq.s32.totalorder %s20, 0
      %p124 = por %p122, %p123
      %s126 = sadd.s32 %s125, 1
      %p129 = scmp.eq.s32.totalorder %s14, 1
      %p130 = scmp.ne.s32.totalorder %s125, %s127
      %p131 = scmp.eq.s32.totalorder %s14, 0
      %p132 = por %p130, %p131
      %p133 = scmp.ne.s32.totalorder %s125, %s127
      %p134 = scmp.eq.s32.totalorder %s19, 1
      %p135 = por %p133, %p134
      %p136 = scmp.ne.s32.totalorder %s127, %s128
      %p137 = scmp.eq.s32.totalorder %s19, 0
      %p138 = por %p136, %p137
      %p139 = scmp.ne.s32.totalorder %s127, %s128
      %p140 = scmp.eq.s32.totalorder %s20, 1
      %p141 = por %p139, %p140
      %p143 = scmp.ne.s32.totalorder %s128, %s142
      %p144 = scmp.eq.s32.totalorder %s20, 0
      %p145 = por %p143, %p144
      %s146 = ssub.s32 %s21, %s33
      %s147 = ssub.s32 %s22, %s29
      %s148 = sor.u32 %s146, %s147
      %p149 = scmp.eq.s32.totalorder %s148, 0
      %s151 = sadd.s32 %s150, 1
      %s152 = scalar_select %p149, %s150, %s151
      %p155 = pneg %p149
      %p156 = scmp.eq.s32.totalorder %s14, 1
      %p157 = por %p155, %p156
      %p158 = scmp.ne.s32.totalorder %s150, %s153
      %p159 = scmp.eq.s32.totalorder %s14, 0
      %p160 = por %p158, %p159
      %p161 = scmp.ne.s32.totalorder %s150, %s153
      %p162 = scmp.eq.s32.totalorder %s19, 1
      %p163 = por %p161, %p162
      %p164 = scmp.ne.s32.totalorder %s153, %s154
      %p165 = scmp.eq.s32.totalorder %s19, 0
      %p166 = por %p164, %p165
      %p167 = scmp.ne.s32.totalorder %s153, %s154
      %p168 = scmp.eq.s32.totalorder %s20, 1
      %p169 = por %p167, %p168
      %p171 = scmp.ne.s32.totalorder %s154, %s170
      %p172 = scmp.eq.s32.totalorder %s20, 0
      %p173 = por %p171, %p172
      %p174 = scmp.le.s32.totalorder 1, %s14
      %p175 = scmp.lt.s32.totalorder %s14, 3
      %p176 = pnand %p174, %p175
      %p177 = pneg %p176
      // Predicated region
      $region9: #{tpu_custom_call.1} parent=5 // pred_check
        _
      $region10: #{tpu_custom_call.1} parent=5 // pred_check_branch
        %179 = sbr.rel (%p176) target = $region12
      $region11: #{tpu_custom_call.1} parent=5 // pred_region
        %s180 = ssub.s32 %s14, 1
        // Predicated region
        $region13: #{tpu_custom_call.1} parent=11 // pred_check
          %p181 = pneg %p75
        $region14: #{tpu_custom_call.1} parent=11 // pred_check_branch
          %183 = sbr.rel (%p181) target = $region16
        $region15: #{tpu_custom_call.1} parent=11 // pred_region
          _
        $region16: #{tpu_custom_call.1} parent=11 // pred_fallthru
          _
        // Predicated region
        $region17: #{tpu_custom_call.1} parent=11 // pred_check
          %p184 = pneg %p96
        $region18: #{tpu_custom_call.1} parent=11 // pred_check_branch
          %186 = sbr.rel (%p184) target = $region20
        $region19: #{tpu_custom_call.1} parent=11 // pred_region
          _
        $region20: #{tpu_custom_call.1} parent=11 // pred_fallthru
          _
        // Predicated region
        $region21: #{tpu_custom_call.1} parent=11 // pred_check
          %p187 = pneg %p117
        $region22: #{tpu_custom_call.1} parent=11 // pred_check_branch
          %189 = sbr.rel (%p187) target = $region24
        $region23: #{tpu_custom_call.1} parent=11 // pred_region
          _
        $region24: #{tpu_custom_call.1} parent=11 // pred_fallthru
          _
        // Predicated region
        $region25: #{tpu_custom_call.1} parent=11 // pred_check
          %p190 = pneg %p138
        $region26: #{tpu_custom_call.1} parent=11 // pred_check_branch
          %192 = sbr.rel (%p190) target = $region28
        $region27: #{tpu_custom_call.1} parent=11 // pred_region
          _
        $region28: #{tpu_custom_call.1} parent=11 // pred_fallthru
          _
      $region12: #{tpu_custom_call.1} parent=5 // pred_fallthru
        _
      %p193 = scmp.lt.s32.totalorder %s14, 2
      // Predicated region
      $region29: #{tpu_custom_call.1} parent=5 // pred_check
        %p194 = pneg %p193
      $region30: #{tpu_custom_call.1} parent=5 // pred_check_branch
        %196 = sbr.rel (%p194) target = $region32
      $region31: #{tpu_custom_call.1} parent=5 // pred_region
        // Predicated region
        $region33: #{tpu_custom_call.1} parent=31 // pred_check
          %p197 = pneg %p48
        $region34: #{tpu_custom_call.1} parent=31 // pred_check_branch
          %199 = sbr.rel (%p197) target = $region36
        $region35: #{tpu_custom_call.1} parent=31 // pred_region
          %p200 = scmp.lt.s32.totalorder %s21, 1
          %s201 = scalar_select %p200, %s21, 1
          %p202 = scmp.lt.s32.totalorder %s22, 0
          %s203 = scalar_select %p202, %s22, 0
          %s204 = sadd.s32 %s203, %s201
          %s205 = smul.addr %s204, 4
          %s206 = scalar_lea.vmem %s0, %s205
        $region36: #{tpu_custom_call.1} parent=31 // pred_fallthru
          _
      $region32: #{tpu_custom_call.1} parent=5 // pred_fallthru
        _
      %p207 = scmp.le.s32.totalorder 1, %s14
      %p208 = scmp.lt.s32.totalorder %s14, 3
      %p209 = pnand %p207, %p208
      %p210 = pneg %p209
      // Predicated region
      $region37: #{tpu_custom_call.1} parent=5 // pred_check
        _
      $region38: #{tpu_custom_call.1} parent=5 // pred_check_branch
        %212 = sbr.rel (%p209) target = $region40
      $region39: #{tpu_custom_call.1} parent=5 // pred_region
        %s213 = ssub.s32 %s14, 1
        %p214 = scmp.lt.s32.totalorder %s23, 1
        %s215 = scalar_select %p214, %s23, 1
        %p216 = scmp.lt.s32.totalorder %s24, 0
        %s217 = scalar_select %p216, %s24, 0
        %s218 = sadd.s32 %s217, %s215
        %s219 = smul.addr %s218, 4
        %s220 = scalar_lea.vmem %s0, %s219
        %p221 = pneg %p54
        %p222 = pneg %p51
        %p223 = pneg %p75
        %p224 = pneg %p72
        %p225 = pneg %p96
        %p226 = pneg %p93
        %p227 = pneg %p117
        %p228 = pneg %p114
        %p229 = pneg %p138
        %p230 = pneg %p135
        %p231 = pneg %p166
        %p232 = pneg %p163
        %s233 = sand.u32 %s153, 1
        %s234 = scalar_lea.sflag [#allocation3], %s233
        %s235 = sand.u32 %s153, 1
        %s236 = smul.addr %s235, 4
        %s237 = scalar_lea.vmem [#allocation2], %s236
        %p238 = scmp.lt.s32.totalorder %s23, 1
        %s239 = scalar_select %p238, %s23, 1
        %p240 = scmp.lt.s32.totalorder %s24, 0
        %s241 = scalar_select %p240, %s24, 0
        %s242 = sadd.s32 %s241, %s239
        %s243 = smul.addr %s242, 4
        %s244 = scalar_lea.vmem %s0, %s243
        %v245 = vld [vmem:[%s1] sm:$0xff]
        %v246 = vld [vmem:[%s2] sm:$0xff]
        %v247 = vld [vmem:[%s3] sm:$0xf]
        %v248 = vld [vmem:[%s4] sm:$0xf]
        %v249 = vld [vmem:[%s244] sm:$0xf]
        %251 = vset.pattern.permute.xlu0 0
        %252 = vperm.xlu0 %251, %v246
        %v253 = vpop.permute.xlu0 %252
        %vm255 = vcmask 31744
        %v257 = vsel %vm255, %v245, 0
        %vm259 = vcmask 1043456
        %v261 = vsel %vm259, %v249, 0
        %263 = vmatprep.subr.mxu0 0.0
        %264 = vmatpush1.msra.mxu0 %v261
        %265 = vmatprep.subr.mxu0 0.0
        %266 = vmatpush1.msra.mxu0 0.0
        %267 = vmatprep.subr.mxu0 0.0
        %268 = vmatpush1.msra.mxu0 0.0
        %269 = vmatprep.subr.mxu0 0.0
        %270 = vmatpush1.msra.mxu0 0.0
        %271 = vmatprep.subr.mxu0 0.0
        %272 = vmatpush1.msra.mxu0 0.0
        %273 = vmatprep.subr.mxu0 0.0
        %274 = vmatpush1.msra.mxu0 0.0
        %275 = vmatprep.subr.mxu0 0.0
        %276 = vmatpush1.msra.mxu0 0.0
        %277 = vmatprep.subr.mxu0 0.0
        %278 = vmatpush1.msra.mxu0 0.0
        %279 = vmatprep.subr.mxu0 0.0
        %280 = vmatpush1.msra.mxu0 0.0
        %281 = vmatprep.subr.mxu0 0.0
        %282 = vmatpush1.msra.mxu0 0.0
        %283 = vmatprep.subr.mxu0 0.0
        %284 = vmatpush1.msra.mxu0 0.0
        %285 = vmatprep.subr.mxu0 0.0
        %286 = vmatpush1.msra.mxu0 0.0
        %287 = vmatprep.subr.mxu0 0.0
        %288 = vmatpush1.msra.mxu0 0.0
        %289 = vmatprep.subr.mxu0 0.0
        %290 = vmatpush1.msra.mxu0 0.0
        %291 = vmatprep.subr.mxu0 0.0
        %292 = vmatpush1.msra.mxu0 0.0
        %293 = vmatprep.subr.mxu0 0.0
        %294 = vmatpush1.msra.mxu0 0.0
        %295 = vmatprep.subr.mxu0 0.0
        %296 = vmatpush1.msra.mxu0 0.0
        %297 = vmatprep.subr.mxu0 0.0
        %298 = vmatpush1.msra.mxu0 0.0
        %299 = vmatprep.subr.mxu0 0.0
        %300 = vmatpush1.msra.mxu0 0.0
        %301 = vmatprep.subr.mxu0 0.0
        %302 = vmatpush1.msra.mxu0 0.0
        %303 = vmatprep.subr.mxu0 0.0
        %304 = vmatpush1.msra.mxu0 0.0
        %305 = vmatprep.subr.mxu0 0.0
        %306 = vmatpush1.msra.mxu0 0.0
        %307 = vmatprep.subr.mxu0 0.0
        %308 = vmatpush1.msra.mxu0 0.0
        %309 = vmatprep.subr.mxu0 0.0
        %310 = vmatpush1.msra.mxu0 0.0
        %311 = vmatprep.subr.mxu0 0.0
        %312 = vmatpush1.msra.mxu0 0.0
        %313 = vmatprep.subr.mxu0 0.0
        %314 = vmatpush1.msra.mxu0 0.0
        %315 = vmatprep.subr.mxu0 0.0
        %316 = vmatpush1.msra.mxu0 0.0
        %317 = vmatprep.subr.mxu0 0.0
        %318 = vmatpush1.msra.mxu0 0.0
        %319 = vmatprep.subr.mxu0 0.0
        %320 = vmatpush1.msra.mxu0 0.0
        %321 = vmatprep.subr.mxu0 0.0
        %322 = vmatpush1.msra.mxu0 0.0
        %323 = vmatprep.subr.mxu0 0.0
        %324 = vmatpush1.msra.mxu0 0.0
        %325 = vmatprep.subr.mxu0 0.0
        %326 = vmatpush1.msra.mxu0 0.0
        %327 = vmatprep.mubr.f32.mxu0 0.0
        %328 = vmatmul.mubr.f32.gmra.mrb[0].mxu0 %v257
        %v329 = vpop.f32.mrb[0].mxu0
        %v330 = vadd.f32 %v253, %v329
        %v331 = vpop.f32.mrb[0].mxu0
        %332 = vdwg.mxu0
        %v333 = vmax.f32 %v330, 0.0
        %335 = vset.pattern.permute.xlu0 0
        %336 = vperm.xlu0 %335, %v248
        %v337 = vpop.permute.xlu0 %336
        %vm339 = vcmask 64512
        %v341 = vsel %vm339, %v247, 0
        %343 = vmatprep.subr.mxu0 0.0
        %344 = vmatpush1.msra.mxu0 %v333
        %345 = vmatprep.subr.mxu0 0.0
        %346 = vmatpush1.msra.mxu0 0.0
        %347 = vmatprep.subr.mxu0 0.0
        %348 = vmatpush1.msra.mxu0 0.0
        %349 = vmatprep.subr.mxu0 0.0
        %350 = vmatpush1.msra.mxu0 0.0
        %351 = vmatprep.subr.mxu0 0.0
        %352 = vmatpush1.msra.mxu0 0.0
        %353 = vmatprep.subr.mxu0 0.0
        %354 = vmatpush1.msra.mxu0 0.0
        %355 = vmatprep.subr.mxu0 0.0
        %356 = vmatpush1.msra.mxu0 0.0
        %357 = vmatprep.subr.mxu0 0.0
        %358 = vmatpush1.msra.mxu0 0.0
        %359 = vmatprep.subr.mxu0 0.0
        %360 = vmatpush1.msra.mxu0 0.0
        %361 = vmatprep.subr.mxu0 0.0
        %362 = vmatpush1.msra.mxu0 0.0
        %363 = vmatprep.subr.mxu0 0.0
        %364 = vmatpush1.msra.mxu0 0.0
        %365 = vmatprep.subr.mxu0 0.0
        %366 = vmatpush1.msra.mxu0 0.0
        %367 = vmatprep.subr.mxu0 0.0
        %368 = vmatpush1.msra.mxu0 0.0
        %369 = vmatprep.subr.mxu0 0.0
        %370 = vmatpush1.msra.mxu0 0.0
        %371 = vmatprep.subr.mxu0 0.0
        %372 = vmatpush1.msra.mxu0 0.0
        %373 = vmatprep.subr.mxu0 0.0
        %374 = vmatpush1.msra.mxu0 0.0
        %375 = vmatprep.subr.mxu0 0.0
        %376 = vmatpush1.msra.mxu0 0.0
        %377 = vmatprep.subr.mxu0 0.0
        %378 = vmatpush1.msra.mxu0 0.0
        %379 = vmatprep.subr.mxu0 0.0
        %380 = vmatpush1.msra.mxu0 0.0
        %381 = vmatprep.subr.mxu0 0.0
        %382 = vmatpush1.msra.mxu0 0.0
        %383 = vmatprep.subr.mxu0 0.0
        %384 = vmatpush1.msra.mxu0 0.0
        %385 = vmatprep.subr.mxu0 0.0
        %386 = vmatpush1.msra.mxu0 0.0
        %387 = vmatprep.subr.mxu0 0.0
        %388 = vmatpush1.msra.mxu0 0.0
        %389 = vmatprep.subr.mxu0 0.0
        %390 = vmatpush1.msra.mxu0 0.0
        %391 = vmatprep.subr.mxu0 0.0
        %392 = vmatpush1.msra.mxu0 0.0
        %393 = vmatprep.subr.mxu0 0.0
        %394 = vmatpush1.msra.mxu0 0.0
        %395 = vmatprep.subr.mxu0 0.0
        %396 = vmatpush1.msra.mxu0 0.0
        %397 = vmatprep.subr.mxu0 0.0
        %398 = vmatpush1.msra.mxu0 0.0
        %399 = vmatprep.subr.mxu0 0.0
        %400 = vmatpush1.msra.mxu0 0.0
        %401 = vmatprep.subr.mxu0 0.0
        %402 = vmatpush1.msra.mxu0 0.0
        %403 = vmatprep.subr.mxu0 0.0
        %404 = vmatpush1.msra.mxu0 0.0
        %405 = vmatprep.subr.mxu0 0.0
        %406 = vmatpush1.msra.mxu0 0.0
        %407 = vmatprep.mubr.f32.mxu0 0.0
        %408 = vmatmul.mubr.f32.gmra.mrb[0].mxu0 %v341
        %v409 = vpop.f32.mrb[0].mxu0
        %v410 = vadd.f32 %v337, %v409
        %v411 = vpop.f32.mrb[0].mxu0
        %412 = vdwg.mxu0
        %v413 = vmax.f32 %v410, 0.0
        %vm414 = vcmask 125952
        %415 = vst.msk [vmem:[%s237] sm:$0xf] %vm414, %v413
        %s416 = sand.u32 %s153, 1
        %s417 = scalar_lea.sflag [#allocation3], %s416
        %s418 = sand.u32 %s153, 1
        %s419 = smul.addr %s418, 4
        %s420 = scalar_lea.vmem [#allocation2], %s419
        // Predicated region
        $region41: #{tpu_custom_call.1} parent=39 // pred_check
          %p421 = pneg %p163
        $region42: #{tpu_custom_call.1} parent=39 // pred_check_branch
          %423 = sbr.rel (%p421) target = $region44
        $region43: #{tpu_custom_call.1} parent=39 // pred_region
          %s425 = ssub.s32 64, 64
          %426 = vsyncadd %s417, %s425
          %s427 = sadd.s32 %s24, %s23
          %s428 = smul.addr %s427, 64
          %s429 = scalar_lea.hbm %s5, %s428
          %s431 = sshll.u32 %s420, 4
          %s432 = int_to_ptr.vmem [resolvable:$true] %s431
          %434 = dma.vmem_to_hbm [thread:$0]  %s432, 64, %s429, %s417
        $region44: #{tpu_custom_call.1} parent=39 // pred_fallthru
          _
      $region40: #{tpu_custom_call.1} parent=5 // pred_fallthru
        _
      %p435 = scmp.le.s32.totalorder 2, %s14
      // Predicated region
      $region45: #{tpu_custom_call.1} parent=5 // pred_check
        %p436 = pneg %p435
      $region46: #{tpu_custom_call.1} parent=5 // pred_check_branch
        %438 = sbr.rel (%p436) target = $region48
      $region47: #{tpu_custom_call.1} parent=5 // pred_region
        %s439 = ssub.s32 %s14, 2
        // Predicated region
        $region49: #{tpu_custom_call.1} parent=47 // pred_check
          %p440 = pneg %p169
        $region50: #{tpu_custom_call.1} parent=47 // pred_check_branch
          %442 = sbr.rel (%p440) target = $region52
        $region51: #{tpu_custom_call.1} parent=47 // pred_region
          %s443 = sand.u32 %s154, 1
          %s444 = scalar_lea.sflag [#allocation3], %s443
          %s445 = sand.u32 %s154, 1
          %s446 = smul.addr %s445, 4
          %s447 = scalar_lea.vmem [#allocation2], %s446
          %448 = dma.done %s444, 64
        $region52: #{tpu_custom_call.1} parent=47 // pred_fallthru
          _
      $region48: #{tpu_custom_call.1} parent=5 // pred_fallthru
        _
    $region6: #{tpu_custom_call.1} parent=1 // loop_footer
      %s18 = sadd.s32 1, %s14
    $region7: #{tpu_custom_call.1} parent=1 // loop_footer_branch
      %13 = sbr.rel target = $region3
    $region8: #{tpu_custom_call.1} parent=1 // loop_exit
      _
    %449 = vsyncpa [#allocation3], 1
    %s450 = scalar_lea.sflag [#allocation3], 1
    %451 = vsyncpa %s450, 1

</llo_original>
